<compile_context>
chip_gen: v5e
topology: v5e:2x2
jax: 0.10.0
libtpu: 0.0.40
codegen_flags: <defaults>
</compile_context>

<pallas_src>
import functools

import jax
import jax.numpy as jnp
from jax.experimental import pallas as pl
from jax.experimental.pallas import tpu as pltpu

_LANES = 128


def _cdiv(a, b):
    return -(-a // b)


def _round_up(a, b):
    return _cdiv(a, b) * b


def _num_tensorcores_per_chip():
    # Best-effort: v4 / v5p / v7x expose 2 TensorCores per chip; v5e / v6e have 1.
    try:
        kind = jax.devices()[0].device_kind.lower()
    except Exception:
        return 1
    return 2 if any(t in kind for t in ("v4", "v5p", "v7", "7x")) else 1


def _ghat_forward_kernel(scale_ref, f_ref, w_ref, b_ref, o_ref):
    # scale_ref: SMEM (1, 1) f32      f_ref: VMEM (tile_r, P) native dtype
    # w_ref:     VMEM (P, D)          b_ref: VMEM (1, D) f32
    # o_ref:     VMEM (tile_r, D)     output in input dtype
    acc = jnp.dot(f_ref[...], w_ref[...], preferred_element_type=jnp.float32)
    o_ref[...] = ((acc + b_ref[...]) * scale_ref[0, 0]).astype(o_ref.dtype)


@functools.partial(jax.jit, static_argnames=("tile_r", "vmem_limit"))
def _ghat_matmul_scaled(scale, Fk, Wk, bk, *, tile_r, vmem_limit):
    """out = scale * (Fk @ Wk + bk), row-tiled over Fk (rows already padded)."""
    R, P = Fk.shape
    _, D = Wk.shape
    f_item = jnp.dtype(Fk.dtype).itemsize
    w_item = jnp.dtype(Wk.dtype).itemsize

    cost = pl.CostEstimate(
        flops=2 * R * P * D,
        transcendentals=0,
        bytes_accessed=(R * P * f_item          # F read
                        + P * D * w_item        # W read (resident)
                        + D * 4                 # bias read
                        + R * D * f_item),      # out write
    )

    return pl.pallas_call(
        _ghat_forward_kernel,
        out_shape=jax.ShapeDtypeStruct((R, D), Fk.dtype),
        grid_spec=pltpu.PrefetchScalarGridSpec(
            num_scalar_prefetch=0,
            grid=(R // tile_r,),
            in_specs=[
                pl.BlockSpec(memory_space=pltpu.SMEM),         # linesearch scalar
                pl.BlockSpec((tile_r, P), lambda i: (i, 0)),   # F tile (native dtype)
                pl.BlockSpec((P, D), lambda i: (0, 0)),        # W (resident)
                pl.BlockSpec((1, D), lambda i: (0, 0)),        # bias (resident)
            ],
            out_specs=pl.BlockSpec((tile_r, D), lambda i: (i, 0)),
        ),
        compiler_params=pltpu.CompilerParams(
            dimension_semantics=("parallel",),
            vmem_limit_bytes=vmem_limit,
        ),
        cost_estimate=cost,
    )(scale, Fk, Wk, bk)


def ghat_gradient_layer_mse_forward(F, W, b, linesearch):
    """out = linesearch * (F @ W + b), computed in a Pallas TPU kernel."""
    N, p = F.shape
    p2, d = W.shape
    assert p == p2

    itemsize = jnp.dtype(F.dtype).itemsize
    sublane = 8 if itemsize >= 4 else 16

    # --- lane-dense output folding: g rows per 128-lane output row -----------
    g = 1
    if 0 < d < _LANES and _LANES % d == 0:
        g_try = _LANES // d
        wbig_bytes = (g_try * p) * (g_try * d) * jnp.dtype(W.dtype).itemsize
        min_f_tile = 2 * sublane * (g_try * p) * itemsize   # double-buffered min tile
        if wbig_bytes <= (4 << 20) and min_f_tile <= (12 << 20):
            g = g_try
    # TODO(synk): for very large p*d (W not VMEM-resident) add a K/d grid axis
    # instead of keeping all of W resident; not needed at these model sizes.

    P, D = g * p, g * d
    if g > 1:
        eye = jnp.eye(g, dtype=W.dtype)
        Wk = (eye[:, None, :, None] * W[None, :, None, :]).reshape(P, D)
        bk = jnp.tile(jnp.asarray(b, jnp.float32).reshape(-1), g).reshape(1, D)
    else:
        Wk = jnp.asarray(W)
        bk = jnp.asarray(b, jnp.float32).reshape(1, d)

    # --- row-tile sizing: ~4 MiB of F per grid step, VMEM-clamped ------------
    f_row_bytes = P * itemsize
    out_row_bytes = max(D, _LANES) * itemsize         # out tile lane-padded to >=128
    w_bytes = P * D * jnp.dtype(Wk.dtype).itemsize

    target_step_bytes = 4 << 20
    tile_r = max(sublane, target_step_bytes // f_row_bytes)
    tile_budget = (24 << 20) - 2 * w_bytes - (1 << 20)
    max_rows = max(sublane, tile_budget // (2 * f_row_bytes + 2 * out_row_bytes))
    tile_r = int(min(tile_r, max_rows))
    tile_r = max(sublane, (tile_r // sublane) * sublane)

    R = _cdiv(N, g)                         # folded rows of real data
    if R <= tile_r:
        tile_r = _round_up(R, sublane)      # single step; no oversized padding
    steps = _cdiv(R, tile_r)

    # --- megacore split: only on 2-TC chips and only with enough work --------
    if _num_tensorcores_per_chip() == 2 and N * p * itemsize >= (4 << 20):
        steps = max(2, steps)
        if steps % 2 == 1:
            steps += 1
        tile_r = max(sublane, _round_up(_cdiv(R, steps), sublane))
        steps = _cdiv(R, tile_r)
        if steps % 2 == 1:                  # keep the two TensorCores balanced
            steps += 1

    Rp = steps * tile_r
    Np = Rp * g

    Fp = jnp.pad(F, ((0, Np - N), (0, 0))) if Np != N else F
    Fk = Fp.reshape(Rp, P) if g > 1 else Fp

    scale = jnp.asarray(linesearch, jnp.float32).reshape(1, 1)

    # Explicit scoped-VMEM limit from the actual allocation (+30% headroom);
    # floor 32 MiB, cap below v7x's 64 MiB physical VMEM (v5e scoped default
    # is only 16 MiB, so being explicit matters once tiles are enlarged).
    need = (2 * tile_r * f_row_bytes + 2 * tile_r * out_row_bytes
            + 2 * w_bytes + (1 << 20))
    vmem_limit = int(min(max(int(need * 1.3), 32 << 20), 48 << 20))

    out = _ghat_matmul_scaled(scale, Fk, Wk, bk, tile_r=tile_r, vmem_limit=vmem_limit)
    if g > 1:
        out = out.reshape(Np, d)
    return out[:N] if Np != N else out


if __name__ == "__main__":
    # Deterministic synthetic parameters (shapes implied by the module:
    # hidden_dim=128 random features p, output dim d, fitted linesearch scalar).
    # TODO(synk): fit_transform (ridge fit + sandwiched line search) is
    # training-time logic and is not part of the forward kernel.
    key = jax.random.PRNGKey(0)
    k_f, k_w, k_b, k_s = jax.random.split(key, 4)

    N = 16          # batch of samples
    p = 128         # hidden_dim (number of random features)
    d = 8           # target dimension

    F = jax.random.normal(k_f, (N, p), dtype=jnp.float32)
    W = jax.random.normal(k_w, (p, d), dtype=jnp.float32) * 0.05   # ridge.W
    b = jax.random.normal(k_b, (d,), dtype=jnp.float32) * 0.01     # ridge.b
    linesearch = jnp.abs(jax.random.normal(k_s, (), dtype=jnp.float32)) + 0.1

    # float32 path (lane-dense folded output, g = 16)
    out = ghat_gradient_layer_mse_forward(F, W, b, linesearch)
    out = jax.block_until_ready(out)
    ref = linesearch * (F @ W + b)
    assert out.shape == (N, d)
    assert out.dtype == jnp.float32
    assert jnp.allclose(out, ref, atol=1e-5, rtol=1e-5)

    # bf16 path (native-dtype inputs, bf16 output, exercises row padding + fold)
    N2 = 48
    F2 = jax.random.normal(jax.random.PRNGKey(1), (N2, p), jnp.float32)
    F2_bf = F2.astype(jnp.bfloat16)
    W_bf = W.astype(jnp.bfloat16)
    out_bf = ghat_gradient_layer_mse_forward(F2_bf, W_bf, b, linesearch)
    out_bf = jax.block_until_ready(out_bf)
    ref_bf = linesearch * (F2_bf.astype(jnp.float32) @ W_bf.astype(jnp.float32) + b)
    assert out_bf.shape == (N2, d)
    assert out_bf.dtype == jnp.bfloat16
    assert jnp.allclose(out_bf.astype(jnp.float32), ref_bf, atol=5e-2, rtol=2e-2)

    # fallback path: d does not divide 128 -> no fold, plain (tile, d) output
    N3, p3, d3 = 24, 64, 5
    F3 = jax.random.normal(jax.random.PRNGKey(2), (N3, p3), jnp.float32)
    W3 = jax.random.normal(jax.random.PRNGKey(3), (p3, d3), jnp.float32) * 0.05
    b3 = jax.random.normal(jax.random.PRNGKey(4), (d3,), jnp.float32) * 0.01
    out3 = ghat_gradient_layer_mse_forward(F3, W3, b3, linesearch)
    out3 = jax.block_until_ready(out3)
    ref3 = linesearch * (F3 @ W3 + b3)
    assert out3.shape == (N3, d3)
    assert jnp.allclose(out3, ref3, atol=1e-5, rtol=1e-5)

    print("KERNEL_OK")
</pallas_src>

<mosaic_0001>
module attributes {stable_mosaic.version = 11 : i64} {
  func.func @_ghat_forward_kernel(%arg0: i32, %arg1: memref<1x1xf32, #tpu.memory_space<smem>>, %arg2: memref<8x2048xf32, #tpu.memory_space<vmem>>, %arg3: memref<2048x128xf32, #tpu.memory_space<vmem>>, %arg4: memref<1x128xf32, #tpu.memory_space<vmem>>, %arg5: memref<8x128xf32, #tpu.memory_space<vmem>>) attributes {dimension_semantics = [#tpu.dimension_semantics<parallel>], iteration_bounds = array<i64: 1>, scalar_prefetch = 0 : i64, scratch_operands = 0 : i64, tpu.core_type = #tpu.core_type<tc>, window_params = [{transform_indices = @transform_0, window_bounds = array<i64: 1, 1>}, {transform_indices = @transform_1, window_bounds = array<i64: 8, 2048>}, {pipeline_mode = #tpu.pipeline_mode<synchronous>, transform_indices = @transform_2, window_bounds = array<i64: 2048, 128>}, {pipeline_mode = #tpu.pipeline_mode<synchronous>, transform_indices = @transform_3, window_bounds = array<i64: 1, 128>}, {transform_indices = @transform_4, window_bounds = array<i64: 8, 128>}]} {
    %c0 = arith.constant 0 : index
    %c0_0 = arith.constant 0 : index
    %0 = vector.load %arg2[%c0, %c0_0] : memref<8x2048xf32, #tpu.memory_space<vmem>>, vector<8x2048xf32>
    %c0_1 = arith.constant 0 : index
    %c0_2 = arith.constant 0 : index
    %1 = vector.load %arg3[%c0_1, %c0_2] : memref<2048x128xf32, #tpu.memory_space<vmem>>, vector<2048x128xf32>
    %cst = arith.constant dense<0.000000e+00> : vector<8x128xf32>
    %2 = tpu.matmul %0, %1, %cst {dimension_numbers = #tpu.dot_dimension_numbers<[1], [0], [0], [1], [0, 0, 1, 1], [], []>} : vector<8x2048xf32>, vector<2048x128xf32>, vector<8x128xf32> -> vector<8x128xf32>
    %c0_3 = arith.constant 0 : index
    %c0_4 = arith.constant 0 : index
    %3 = vector.load %arg4[%c0_3, %c0_4] : memref<1x128xf32, #tpu.memory_space<vmem>>, vector<1x128xf32>
    %4 = vector.broadcast %3 : vector<1x128xf32> to vector<8x128xf32>
    %5 = arith.addf %2, %4 : vector<8x128xf32>
    %c0_5 = arith.constant 0 : index
    %c0_6 = arith.constant 0 : index
    %6 = memref.load %arg1[%c0_5, %c0_6] : memref<1x1xf32, #tpu.memory_space<smem>>
    %7 = vector.broadcast %6 : f32 to vector<8x128xf32>
    %8 = arith.mulf %5, %7 : vector<8x128xf32>
    %c0_7 = arith.constant 0 : index
    %c0_8 = arith.constant 0 : index
    %9 = vector.load %arg5[%c0_7, %c0_8] : memref<8x128xf32, #tpu.memory_space<vmem>>, vector<8x128xf32>
    tpu.vector_store %arg5[%c0_7, %c0_8], %8 {strides = array<i32>} : memref<8x128xf32, #tpu.memory_space<vmem>>, vector<8x128xf32>,
    return
  }
  func.func @transform_0(%arg0: i32) -> (i32, i32) {
    %c0_i32 = arith.constant 0 : i32
    %c0_i32_0 = arith.constant 0 : i32
    %c0_i32_1 = arith.constant 0 : i32
    return %c0_i32, %c0_i32_0 : i32, i32
  }
  func.func @transform_1(%arg0: i32) -> (i32, i32) {
    %c0_i32 = arith.constant 0 : i32
    %c0_i32_0 = arith.constant 0 : i32
    return %arg0, %c0_i32 : i32, i32
  }
  func.func @transform_2(%arg0: i32) -> (i32, i32) {
    %c0_i32 = arith.constant 0 : i32
    %c0_i32_0 = arith.constant 0 : i32
    %c0_i32_1 = arith.constant 0 : i32
    return %c0_i32, %c0_i32_0 : i32, i32
  }
  func.func @transform_3(%arg0: i32) -> (i32, i32) {
    %c0_i32 = arith.constant 0 : i32
    %c0_i32_0 = arith.constant 0 : i32
    %c0_i32_1 = arith.constant 0 : i32
    return %c0_i32, %c0_i32_0 : i32, i32
  }
  func.func @transform_4(%arg0: i32) -> (i32, i32) {
    %c0_i32 = arith.constant 0 : i32
    %c0_i32_0 = arith.constant 0 : i32
    return %arg0, %c0_i32 : i32, i32
  }
}

</mosaic_0001>

<llo_original>
// kernel: _ghat_matmul_scaled.1
$region0: #{_ghat_matmul_scaled.1}
  #allocation0 [shape = 'u32[]', space=smem, size = 0x4, offset = 0x4, fixed_abs, tag = 'smem constant byte address 0x4 - core index']
  #allocation1 [shape = 'u32[72,128]{1,0:T(1,128)}', space=vmem, size = 0x9000, scoped, tag = 'internal scratch']
  #allocation2 [shape = 'f32[1,1]{1,0:T(1,128)S(6)}', space=smem, size = 0x200, scoped, tag = 'scoped memory for _ghat_matmul_scaled.1']
  %s0 = inlined_call_operand.<no memory space> [shape: f32[1,1], index: 0, kind: input, shape index: {}]
  %s1 = inlined_call_operand.hbm [shape: f32[8,2048], index: 1, kind: input, shape index: {}]
  %s2 = inlined_call_operand.hbm [shape: f32[2048,128], index: 2, kind: input, shape index: {}]
  %s3 = inlined_call_operand.vmem [shape: f32[1,128], index: 3, kind: input, shape index: {}]
  %s4 = inlined_call_operand.hbm [shape: f32[8,128], index: 4, kind: output, shape index: {}]
  %s5 = sld [smem:[#allocation0]]
  $region34: #{_ghat_matmul_scaled.1} parent=0
    _
  %s7 = ssub.s32 1, %s5
  %s8 = scalar_select 0, %s7, %s5
  %9 = sst [smem:[#allocation2]] %s0
  $region1: #{_ghat_matmul_scaled.1} parent=0
    #allocation3 [shape = 'u8[65536]{0}', space=vmem, size = 0x10000, scoped, tag = 'input window, operand 1, single buffered']
    #allocation4 [shape = 's32[1]{0}', space=sflag, size = 0x4, scoped, tag = 'scoped memory for _ghat_matmul_scaled.1']
    #allocation5 [shape = 's32[1]{0}', space=sflag, size = 0x4, scoped, tag = 'scoped memory for _ghat_matmul_scaled.1']
    #allocation6 [shape = 'u8[1048576]{0}', space=vmem, size = 0x100000, scoped, tag = 'input window, operand 2, single buffered']
    #allocation7 [shape = 's32[1]{0}', space=sflag, size = 0x4, scoped, tag = 'scoped memory for _ghat_matmul_scaled.1']
    #allocation8 [shape = 'u8[4096]{0}', space=vmem, size = 0x1000, scoped, tag = 'output window, operand 0, single buffered']
    %10 = vsyncpa [#allocation4], 0
    %11 = vsyncpa [#allocation7], 0
    %12 = vsyncpa [#allocation5], 0
    // Predicated region
    $region2: #{_ghat_matmul_scaled.1} parent=1 // pred_check
      _
    $region3: #{_ghat_matmul_scaled.1} parent=1 // pred_check_branch
      %14 = sbr.rel (0) target = $region5
    $region4: #{_ghat_matmul_scaled.1} parent=1 // pred_region
      _
    $region5: #{_ghat_matmul_scaled.1} parent=1 // pred_fallthru
      _
    // Predicated region
    $region6: #{_ghat_matmul_scaled.1} parent=1 // pred_check
      _
    $region7: #{_ghat_matmul_scaled.1} parent=1 // pred_check_branch
      %16 = sbr.rel (0) target = $region9
    $region8: #{_ghat_matmul_scaled.1} parent=1 // pred_region
      %18 = vsyncadd [#allocation4], 0
      %s20 = sshll.u32 %s1, 4
      %s21 = int_to_ptr.hbm [resolvable:$true] %s20
      %s22 = sshll.u32 [#allocation3], 4
      %s23 = int_to_ptr.vmem [resolvable:$true] %s22
      %25 = dma.hbm_to_vmem [thread:$0]  %s21, 2048, %s23, [#allocation4]
    $region9: #{_ghat_matmul_scaled.1} parent=1 // pred_fallthru
      _
    // Predicated region
    $region10: #{_ghat_matmul_scaled.1} parent=1 // pred_check
      _
    $region11: #{_ghat_matmul_scaled.1} parent=1 // pred_check_branch
      %27 = sbr.rel (0) target = $region13
    $region12: #{_ghat_matmul_scaled.1} parent=1 // pred_region
      %29 = vsyncadd [#allocation7], 0
      %s30 = sshll.u32 %s2, 4
      %s31 = int_to_ptr.hbm [resolvable:$true] %s30
      %s32 = sshll.u32 [#allocation6], 4
      %s33 = int_to_ptr.vmem [resolvable:$true] %s32
      %38 = dma.hbm_to_vmem [thread:$0]  %s31, 32768, %s33, [#allocation7], 128, 128, 8
    $region13: #{_ghat_matmul_scaled.1} parent=1 // pred_fallthru
      _
    // Predicated region
    $region14: #{_ghat_matmul_scaled.1} parent=1 // pred_check
      _
    $region15: #{_ghat_matmul_scaled.1} parent=1 // pred_check_branch
      %40 = sbr.rel (0) target = $region17
    $region16: #{_ghat_matmul_scaled.1} parent=1 // pred_region
      _
    $region17: #{_ghat_matmul_scaled.1} parent=1 // pred_fallthru
      _
    // Predicated region
    $region18: #{_ghat_matmul_scaled.1} parent=1 // pred_check
      _
    $region19: #{_ghat_matmul_scaled.1} parent=1 // pred_check_branch
      %42 = sbr.rel (0) target = $region21
    $region20: #{_ghat_matmul_scaled.1} parent=1 // pred_region
      %44 = dma.done [#allocation4], 2048
    $region21: #{_ghat_matmul_scaled.1} parent=1 // pred_fallthru
      _
    // Predicated region
    $region22: #{_ghat_matmul_scaled.1} parent=1 // pred_check
      _
    $region23: #{_ghat_matmul_scaled.1} parent=1 // pred_check_branch
      %46 = sbr.rel (0) target = $region25
    $region24: #{_ghat_matmul_scaled.1} parent=1 // pred_region
      %48 = dma.done [#allocation7], 32768
    $region25: #{_ghat_matmul_scaled.1} parent=1 // pred_fallthru
      _
    %v49 = vld [vmem:[#allocation3] sm:$0xff]
    %v50 = vld [vmem:[#allocation3 + $0x8] sm:$0xff]
    %v51 = vld [vmem:[#allocation3 + $0x10] sm:$0xff]
    %v52 = vld [vmem:[#allocation3 + $0x18] sm:$0xff]
    %v53 = vld [vmem:[#allocation3 + $0x20] sm:$0xff]
    %v54 = vld [vmem:[#allocation3 + $0x28] sm:$0xff]
    %v55 = vld [vmem:[#allocation3 + $0x30] sm:$0xff]
    %v56 = vld [vmem:[#allocation3 + $0x38] sm:$0xff]
    %v57 = vld [vmem:[#allocation3 + $0x40] sm:$0xff]
    %v58 = vld [vmem:[#allocation3 + $0x48] sm:$0xff]
    %v59 = vld [vmem:[#allocation3 + $0x50] sm:$0xff]
    %v60 = vld [vmem:[#allocation3 + $0x58] sm:$0xff]
    %v61 = vld [vmem:[#allocation3 + $0x60] sm:$0xff]
    %v62 = vld [vmem:[#allocation3 + $0x68] sm:$0xff]
    %v63 = vld [vmem:[#allocation3 + $0x70] sm:$0xff]
    %v64 = vld [vmem:[#allocation3 + $0x78] sm:$0xff]
    %v65 = vld [vmem:[#allocation6] sm:$0xff]
    %v66 = vld [vmem:[#allocation6 + $0x8] sm:$0xff]
    %v67 = vld [vmem:[#allocation6 + $0x10] sm:$0xff]
    %v68 = vld [vmem:[#allocation6 + $0x18] sm:$0xff]
    %v69 = vld [vmem:[#allocation6 + $0x20] sm:$0xff]
    %v70 = vld [vmem:[#allocation6 + $0x28] sm:$0xff]
    %v71 = vld [vmem:[#allocation6 + $0x30] sm:$0xff]
    %v72 = vld [vmem:[#allocation6 + $0x38] sm:$0xff]
    %v73 = vld [vmem:[#allocation6 + $0x40] sm:$0xff]
    %v74 = vld [vmem:[#allocation6 + $0x48] sm:$0xff]
    %v75 = vld [vmem:[#allocation6 + $0x50] sm:$0xff]
    %v76 = vld [vmem:[#allocation6 + $0x58] sm:$0xff]
    %v77 = vld [vmem:[#allocation6 + $0x60] sm:$0xff]
    %v78 = vld [vmem:[#allocation6 + $0x68] sm:$0xff]
    %v79 = vld [vmem:[#allocation6 + $0x70] sm:$0xff]
    %v80 = vld [vmem:[#allocation6 + $0x78] sm:$0xff]
    %v81 = vld [vmem:[#allocation6 + $0x80] sm:$0xff]
    %v82 = vld [vmem:[#allocation6 + $0x88] sm:$0xff]
    %v83 = vld [vmem:[#allocation6 + $0x90] sm:$0xff]
    %v84 = vld [vmem:[#allocation6 + $0x98] sm:$0xff]
    %v85 = vld [vmem:[#allocation6 + $0xa0] sm:$0xff]
    %v86 = vld [vmem:[#allocation6 + $0xa8] sm:$0xff]
    %v87 = vld [vmem:[#allocation6 + $0xb0] sm:$0xff]
    %v88 = vld [vmem:[#allocation6 + $0xb8] sm:$0xff]
    %v89 = vld [vmem:[#allocation6 + $0xc0] sm:$0xff]
    %v90 = vld [vmem:[#allocation6 + $0xc8] sm:$0xff]
    %v91 = vld [vmem:[#allocation6 + $0xd0] sm:$0xff]
    %v92 = vld [vmem:[#allocation6 + $0xd8] sm:$0xff]
    %v93 = vld [vmem:[#allocation6 + $0xe0] sm:$0xff]
    %v94 = vld [vmem:[#allocation6 + $0xe8] sm:$0xff]
    %v95 = vld [vmem:[#allocation6 + $0xf0] sm:$0xff]
    %v96 = vld [vmem:[#allocation6 + $0xf8] sm:$0xff]
    %v97 = vld [vmem:[#allocation6 + $0x100] sm:$0xff]
    %v98 = vld [vmem:[#allocation6 + $0x108] sm:$0xff]
    %v99 = vld [vmem:[#allocation6 + $0x110] sm:$0xff]
    %v100 = vld [vmem:[#allocation6 + $0x118] sm:$0xff]
    %v101 = vld [vmem:[#allocation6 + $0x120] sm:$0xff]
    %v102 = vld [vmem:[#allocation6 + $0x128] sm:$0xff]
    %v103 = vld [vmem:[#allocation6 + $0x130] sm:$0xff]
    %v104 = vld [vmem:[#allocation6 + $0x138] sm:$0xff]
    %v105 = vld [vmem:[#allocation6 + $0x140] sm:$0xff]
    %v106 = vld [vmem:[#allocation6 + $0x148] sm:$0xff]
    %v107 = vld [vmem:[#allocation6 + $0x150] sm:$0xff]
    %v108 = vld [vmem:[#allocation6 + $0x158] sm:$0xff]
    %v109 = vld [vmem:[#allocation6 + $0x160] sm:$0xff]
    %v110 = vld [vmem:[#allocation6 + $0x168] sm:$0xff]
    %v111 = vld [vmem:[#allocation6 + $0x170] sm:$0xff]
    %v112 = vld [vmem:[#allocation6 + $0x178] sm:$0xff]
    %v113 = vld [vmem:[#allocation6 + $0x180] sm:$0xff]
    %v114 = vld [vmem:[#allocation6 + $0x188] sm:$0xff]
    %v115 = vld [vmem:[#allocation6 + $0x190] sm:$0xff]
    %v116 = vld [vmem:[#allocation6 + $0x198] sm:$0xff]
    %v117 = vld [vmem:[#allocation6 + $0x1a0] sm:$0xff]
    %v118 = vld [vmem:[#allocation6 + $0x1a8] sm:$0xff]
    %v119 = vld [vmem:[#allocation6 + $0x1b0] sm:$0xff]
    %v120 = vld [vmem:[#allocation6 + $0x1b8] sm:$0xff]
    %v121 = vld [vmem:[#allocation6 + $0x1c0] sm:$0xff]
    %v122 = vld [vmem:[#allocation6 + $0x1c8] sm:$0xff]
    %v123 = vld [vmem:[#allocation6 + $0x1d0] sm:$0xff]
    %v124 = vld [vmem:[#allocation6 + $0x1d8] sm:$0xff]
    %v125 = vld [vmem:[#allocation6 + $0x1e0] sm:$0xff]
    %v126 = vld [vmem:[#allocation6 + $0x1e8] sm:$0xff]
    %v127 = vld [vmem:[#allocation6 + $0x1f0] sm:$0xff]
    %v128 = vld [vmem:[#allocation6 + $0x1f8] sm:$0xff]
    %v129 = vld [vmem:[#allocation6 + $0x200] sm:$0xff]
    %v130 = vld [vmem:[#allocation6 + $0x208] sm:$0xff]
    %v131 = vld [vmem:[#allocation6 + $0x210] sm:$0xff]
    %v132 = vld [vmem:[#allocation6 + $0x218] sm:$0xff]
    %v133 = vld [vmem:[#allocation6 + $0x220] sm:$0xff]
    %v134 = vld [vmem:[#allocation6 + $0x228] sm:$0xff]
    %v135 = vld [vmem:[#allocation6 + $0x230] sm:$0xff]
    %v136 = vld [vmem:[#allocation6 + $0x238] sm:$0xff]
    %v137 = vld [vmem:[#allocation6 + $0x240] sm:$0xff]
    %v138 = vld [vmem:[#allocation6 + $0x248] sm:$0xff]
    %v139 = vld [vmem:[#allocation6 + $0x250] sm:$0xff]
    %v140 = vld [vmem:[#allocation6 + $0x258] sm:$0xff]
    %v141 = vld [vmem:[#allocation6 + $0x260] sm:$0xff]
    %v142 = vld [vmem:[#allocation6 + $0x268] sm:$0xff]
    %v143 = vld [vmem:[#allocation6 + $0x270] sm:$0xff]
    %v144 = vld [vmem:[#allocation6 + $0x278] sm:$0xff]
    %v145 = vld [vmem:[#allocation6 + $0x280] sm:$0xff]
    %v146 = vld [vmem:[#allocation6 + $0x288] sm:$0xff]
    %v147 = vld [vmem:[#allocation6 + $0x290] sm:$0xff]
    %v148 = vld [vmem:[#allocation6 + $0x298] sm:$0xff]
    %v149 = vld [vmem:[#allocation6 + $0x2a0] sm:$0xff]
    %v150 = vld [vmem:[#allocation6 + $0x2a8] sm:$0xff]
    %v151 = vld [vmem:[#allocation6 + $0x2b0] sm:$0xff]
    %v152 = vld [vmem:[#allocation6 + $0x2b8] sm:$0xff]
    %v153 = vld [vmem:[#allocation6 + $0x2c0] sm:$0xff]
    %v154 = vld [vmem:[#allocation6 + $0x2c8] sm:$0xff]
    %v155 = vld [vmem:[#allocation6 + $0x2d0] sm:$0xff]
    %v156 = vld [vmem:[#allocation6 + $0x2d8] sm:$0xff]
    %v157 = vld [vmem:[#allocation6 + $0x2e0] sm:$0xff]
    %v158 = vld [vmem:[#allocation6 + $0x2e8] sm:$0xff]
    %v159 = vld [vmem:[#allocation6 + $0x2f0] sm:$0xff]
    %v160 = vld [vmem:[#allocation6 + $0x2f8] sm:$0xff]
    %v161 = vld [vmem:[#allocation6 + $0x300] sm:$0xff]
    %v162 = vld [vmem:[#allocation6 + $0x308] sm:$0xff]
    %v163 = vld [vmem:[#allocation6 + $0x310] sm:$0xff]
    %v164 = vld [vmem:[#allocation6 + $0x318] sm:$0xff]
    %v165 = vld [vmem:[#allocation6 + $0x320] sm:$0xff]
    %v166 = vld [vmem:[#allocation6 + $0x328] sm:$0xff]
    %v167 = vld [vmem:[#allocation6 + $0x330] sm:$0xff]
    %v168 = vld [vmem:[#allocation6 + $0x338] sm:$0xff]
    %v169 = vld [vmem:[#allocation6 + $0x340] sm:$0xff]
    %v170 = vld [vmem:[#allocation6 + $0x348] sm:$0xff]
    %v171 = vld [vmem:[#allocation6 + $0x350] sm:$0xff]
    %v172 = vld [vmem:[#allocation6 + $0x358] sm:$0xff]
    %v173 = vld [vmem:[#allocation6 + $0x360] sm:$0xff]
    %v174 = vld [vmem:[#allocation6 + $0x368] sm:$0xff]
    %v175 = vld [vmem:[#allocation6 + $0x370] sm:$0xff]
    %v176 = vld [vmem:[#allocation6 + $0x378] sm:$0xff]
    %v177 = vld [vmem:[#allocation6 + $0x380] sm:$0xff]
    %v178 = vld [vmem:[#allocation6 + $0x388] sm:$0xff]
    %v179 = vld [vmem:[#allocation6 + $0x390] sm:$0xff]
    %v180 = vld [vmem:[#allocation6 + $0x398] sm:$0xff]
    %v181 = vld [vmem:[#allocation6 + $0x3a0] sm:$0xff]
    %v182 = vld [vmem:[#allocation6 + $0x3a8] sm:$0xff]
    %v183 = vld [vmem:[#allocation6 + $0x3b0] sm:$0xff]
    %v184 = vld [vmem:[#allocation6 + $0x3b8] sm:$0xff]
    %v185 = vld [vmem:[#allocation6 + $0x3c0] sm:$0xff]
    %v186 = vld [vmem:[#allocation6 + $0x3c8] sm:$0xff]
    %v187 = vld [vmem:[#allocation6 + $0x3d0] sm:$0xff]
    %v188 = vld [vmem:[#allocation6 + $0x3d8] sm:$0xff]
    %v189 = vld [vmem:[#allocation6 + $0x3e0] sm:$0xff]
    %v190 = vld [vmem:[#allocation6 + $0x3e8] sm:$0xff]
    %v191 = vld [vmem:[#allocation6 + $0x3f0] sm:$0xff]
    %v192 = vld [vmem:[#allocation6 + $0x3f8] sm:$0xff]
    %v193 = vld [vmem:[#allocation6 + $0x400] sm:$0xff]
    %v194 = vld [vmem:[#allocation6 + $0x408] sm:$0xff]
    %v195 = vld [vmem:[#allocation6 + $0x410] sm:$0xff]
    %v196 = vld [vmem:[#allocation6 + $0x418] sm:$0xff]
    %v197 = vld [vmem:[#allocation6 + $0x420] sm:$0xff]
    %v198 = vld [vmem:[#allocation6 + $0x428] sm:$0xff]
    %v199 = vld [vmem:[#allocation6 + $0x430] sm:$0xff]
    %v200 = vld [vmem:[#allocation6 + $0x438] sm:$0xff]
    %v201 = vld [vmem:[#allocation6 + $0x440] sm:$0xff]
    %v202 = vld [vmem:[#allocation6 + $0x448] sm:$0xff]
    %v203 = vld [vmem:[#allocation6 + $0x450] sm:$0xff]
    %v204 = vld [vmem:[#allocation6 + $0x458] sm:$0xff]
    %v205 = vld [vmem:[#allocation6 + $0x460] sm:$0xff]
    %v206 = vld [vmem:[#allocation6 + $0x468] sm:$0xff]
    %v207 = vld [vmem:[#allocation6 + $0x470] sm:$0xff]
    %v208 = vld [vmem:[#allocation6 + $0x478] sm:$0xff]
    %v209 = vld [vmem:[#allocation6 + $0x480] sm:$0xff]
    %v210 = vld [vmem:[#allocation6 + $0x488] sm:$0xff]
    %v211 = vld [vmem:[#allocation6 + $0x490] sm:$0xff]
    %v212 = vld [vmem:[#allocation6 + $0x498] sm:$0xff]
    %v213 = vld [vmem:[#allocation6 + $0x4a0] sm:$0xff]
    %v214 = vld [vmem:[#allocation6 + $0x4a8] sm:$0xff]
    %v215 = vld [vmem:[#allocation6 + $0x4b0] sm:$0xff]
    %v216 = vld [vmem:[#allocation6 + $0x4b8] sm:$0xff]
    %v217 = vld [vmem:[#allocation6 + $0x4c0] sm:$0xff]
    %v218 = vld [vmem:[#allocation6 + $0x4c8] sm:$0xff]
    %v219 = vld [vmem:[#allocation6 + $0x4d0] sm:$0xff]
    %v220 = vld [vmem:[#allocation6 + $0x4d8] sm:$0xff]
    %v221 = vld [vmem:[#allocation6 + $0x4e0] sm:$0xff]
    %v222 = vld [vmem:[#allocation6 + $0x4e8] sm:$0xff]
    %v223 = vld [vmem:[#allocation6 + $0x4f0] sm:$0xff]
    %v224 = vld [vmem:[#allocation6 + $0x4f8] sm:$0xff]
    %v225 = vld [vmem:[#allocation6 + $0x500] sm:$0xff]
    %v226 = vld [vmem:[#allocation6 + $0x508] sm:$0xff]
    %v227 = vld [vmem:[#allocation6 + $0x510] sm:$0xff]
    %v228 = vld [vmem:[#allocation6 + $0x518] sm:$0xff]
    %v229 = vld [vmem:[#allocation6 + $0x520] sm:$0xff]
    %v230 = vld [vmem:[#allocation6 + $0x528] sm:$0xff]
    %v231 = vld [vmem:[#allocation6 + $0x530] sm:$0xff]
    %v232 = vld [vmem:[#allocation6 + $0x538] sm:$0xff]
    %v233 = vld [vmem:[#allocation6 + $0x540] sm:$0xff]
    %v234 = vld [vmem:[#allocation6 + $0x548] sm:$0xff]
    %v235 = vld [vmem:[#allocation6 + $0x550] sm:$0xff]
    %v236 = vld [vmem:[#allocation6 + $0x558] sm:$0xff]
    %v237 = vld [vmem:[#allocation6 + $0x560] sm:$0xff]
    %v238 = vld [vmem:[#allocation6 + $0x568] sm:$0xff]
    %v239 = vld [vmem:[#allocation6 + $0x570] sm:$0xff]
    %v240 = vld [vmem:[#allocation6 + $0x578] sm:$0xff]
    %v241 = vld [vmem:[#allocation6 + $0x580] sm:$0xff]
    %v242 = vld [vmem:[#allocation6 + $0x588] sm:$0xff]
    %v243 = vld [vmem:[#allocation6 + $0x590] sm:$0xff]
    %v244 = vld [vmem:[#allocation6 + $0x598] sm:$0xff]
    %v245 = vld [vmem:[#allocation6 + $0x5a0] sm:$0xff]
    %v246 = vld [vmem:[#allocation6 + $0x5a8] sm:$0xff]
    %v247 = vld [vmem:[#allocation6 + $0x5b0] sm:$0xff]
    %v248 = vld [vmem:[#allocation6 + $0x5b8] sm:$0xff]
    %v249 = vld [vmem:[#allocation6 + $0x5c0] sm:$0xff]
    %v250 = vld [vmem:[#allocation6 + $0x5c8] sm:$0xff]
    %v251 = vld [vmem:[#allocation6 + $0x5d0] sm:$0xff]
    %v252 = vld [vmem:[#allocation6 + $0x5d8] sm:$0xff]
    %v253 = vld [vmem:[#allocation6 + $0x5e0] sm:$0xff]
    %v254 = vld [vmem:[#allocation6 + $0x5e8] sm:$0xff]
    %v255 = vld [vmem:[#allocation6 + $0x5f0] sm:$0xff]
    %v256 = vld [vmem:[#allocation6 + $0x5f8] sm:$0xff]
    %v257 = vld [vmem:[#allocation6 + $0x600] sm:$0xff]
    %v258 = vld [vmem:[#allocation6 + $0x608] sm:$0xff]
    %v259 = vld [vmem:[#allocation6 + $0x610] sm:$0xff]
    %v260 = vld [vmem:[#allocation6 + $0x618] sm:$0xff]
    %v261 = vld [vmem:[#allocation6 + $0x620] sm:$0xff]
    %v262 = vld [vmem:[#allocation6 + $0x628] sm:$0xff]
    %v263 = vld [vmem:[#allocation6 + $0x630] sm:$0xff]
    %v264 = vld [vmem:[#allocation6 + $0x638] sm:$0xff]
    %v265 = vld [vmem:[#allocation6 + $0x640] sm:$0xff]
    %v266 = vld [vmem:[#allocation6 + $0x648] sm:$0xff]
    %v267 = vld [vmem:[#allocation6 + $0x650] sm:$0xff]
    %v268 = vld [vmem:[#allocation6 + $0x658] sm:$0xff]
    %v269 = vld [vmem:[#allocation6 + $0x660] sm:$0xff]
    %v270 = vld [vmem:[#allocation6 + $0x668] sm:$0xff]
    %v271 = vld [vmem:[#allocation6 + $0x670] sm:$0xff]
    %v272 = vld [vmem:[#allocation6 + $0x678] sm:$0xff]
    %v273 = vld [vmem:[#allocation6 + $0x680] sm:$0xff]
    %v274 = vld [vmem:[#allocation6 + $0x688] sm:$0xff]
    %v275 = vld [vmem:[#allocation6 + $0x690] sm:$0xff]
    %v276 = vld [vmem:[#allocation6 + $0x698] sm:$0xff]
    %v277 = vld [vmem:[#allocation6 + $0x6a0] sm:$0xff]
    %v278 = vld [vmem:[#allocation6 + $0x6a8] sm:$0xff]
    %v279 = vld [vmem:[#allocation6 + $0x6b0] sm:$0xff]
    %v280 = vld [vmem:[#allocation6 + $0x6b8] sm:$0xff]
    %v281 = vld [vmem:[#allocation6 + $0x6c0] sm:$0xff]
    %v282 = vld [vmem:[#allocation6 + $0x6c8] sm:$0xff]
    %v283 = vld [vmem:[#allocation6 + $0x6d0] sm:$0xff]
    %v284 = vld [vmem:[#allocation6 + $0x6d8] sm:$0xff]
    %v285 = vld [vmem:[#allocation6 + $0x6e0] sm:$0xff]
    %v286 = vld [vmem:[#allocation6 + $0x6e8] sm:$0xff]
    %v287 = vld [vmem:[#allocation6 + $0x6f0] sm:$0xff]
    %v288 = vld [vmem:[#allocation6 + $0x6f8] sm:$0xff]
    %v289 = vld [vmem:[#allocation6 + $0x700] sm:$0xff]
    %v290 = vld [vmem:[#allocation6 + $0x708] sm:$0xff]
    %v291 = vld [vmem:[#allocation6 + $0x710] sm:$0xff]
    %v292 = vld [vmem:[#allocation6 + $0x718] sm:$0xff]
    %v293 = vld [vmem:[#allocation6 + $0x720] sm:$0xff]
    %v294 = vld [vmem:[#allocation6 + $0x728] sm:$0xff]
    %v295 = vld [vmem:[#allocation6 + $0x730] sm:$0xff]
    %v296 = vld [vmem:[#allocation6 + $0x738] sm:$0xff]
    %v297 = vld [vmem:[#allocation6 + $0x740] sm:$0xff]
    %v298 = vld [vmem:[#allocation6 + $0x748] sm:$0xff]
    %v299 = vld [vmem:[#allocation6 + $0x750] sm:$0xff]
    %v300 = vld [vmem:[#allocation6 + $0x758] sm:$0xff]
    %v301 = vld [vmem:[#allocation6 + $0x760] sm:$0xff]
    %v302 = vld [vmem:[#allocation6 + $0x768] sm:$0xff]
    %v303 = vld [vmem:[#allocation6 + $0x770] sm:$0xff]
    %v304 = vld [vmem:[#allocation6 + $0x778] sm:$0xff]
    %v305 = vld [vmem:[#allocation6 + $0x780] sm:$0xff]
    %v306 = vld [vmem:[#allocation6 + $0x788] sm:$0xff]
    %v307 = vld [vmem:[#allocation6 + $0x790] sm:$0xff]
    %v308 = vld [vmem:[#allocation6 + $0x798] sm:$0xff]
    %v309 = vld [vmem:[#allocation6 + $0x7a0] sm:$0xff]
    %v310 = vld [vmem:[#allocation6 + $0x7a8] sm:$0xff]
    %v311 = vld [vmem:[#allocation6 + $0x7b0] sm:$0xff]
    %v312 = vld [vmem:[#allocation6 + $0x7b8] sm:$0xff]
    %v313 = vld [vmem:[#allocation6 + $0x7c0] sm:$0xff]
    %v314 = vld [vmem:[#allocation6 + $0x7c8] sm:$0xff]
    %v315 = vld [vmem:[#allocation6 + $0x7d0] sm:$0xff]
    %v316 = vld [vmem:[#allocation6 + $0x7d8] sm:$0xff]
    %v317 = vld [vmem:[#allocation6 + $0x7e0] sm:$0xff]
    %v318 = vld [vmem:[#allocation6 + $0x7e8] sm:$0xff]
    %v319 = vld [vmem:[#allocation6 + $0x7f0] sm:$0xff]
    %v320 = vld [vmem:[#allocation6 + $0x7f8] sm:$0xff]
    %v321 = vld [vmem:[%s3] sm:$0x1]
    %v323 = vperm.slane %v321, 0
    %325 = vmatpush.msra.mxu0 %v80
    %326 = vmatpush.msra.mxu0 %v79
    %327 = vmatpush.msra.mxu0 %v78
    %328 = vmatpush.msra.mxu0 %v77
    %329 = vmatpush.msra.mxu0 %v76
    %330 = vmatpush.msra.mxu0 %v75
    %331 = vmatpush.msra.mxu0 %v74
    %332 = vmatpush.msra.mxu0 %v73
    %333 = vmatpush.msra.mxu0 %v72
    %334 = vmatpush.msra.mxu0 %v71
    %335 = vmatpush.msra.mxu0 %v70
    %336 = vmatpush.msra.mxu0 %v69
    %337 = vmatpush.msra.mxu0 %v68
    %338 = vmatpush.msra.mxu0 %v67
    %339 = vmatpush.msra.mxu0 %v66
    %340 = vmatpush.msra.mxu0 %v65
    %341 = vmatmul.f32.gmra.mxu0 %v49
    %v342 = vpop.f32.mrf.mxu0
    %v343 = vadd.f32 %v323, %v342
    %344 = vdwg.mxu0
    %345 = vmatpush.msra.mxu0 %v96
    %346 = vmatpush.msra.mxu0 %v95
    %347 = vmatpush.msra.mxu0 %v94
    %348 = vmatpush.msra.mxu0 %v93
    %349 = vmatpush.msra.mxu0 %v92
    %350 = vmatpush.msra.mxu0 %v91
    %351 = vmatpush.msra.mxu0 %v90
    %352 = vmatpush.msra.mxu0 %v89
    %353 = vmatpush.msra.mxu0 %v88
    %354 = vmatpush.msra.mxu0 %v87
    %355 = vmatpush.msra.mxu0 %v86
    %356 = vmatpush.msra.mxu0 %v85
    %357 = vmatpush.msra.mxu0 %v84
    %358 = vmatpush.msra.mxu0 %v83
    %359 = vmatpush.msra.mxu0 %v82
    %360 = vmatpush.msra.mxu0 %v81
    %361 = vmatmul.f32.gmra.mxu0 %v50
    %v362 = vpop.f32.mrf.mxu0
    %v363 = vadd.f32 %v343, %v362
    %364 = vdwg.mxu0
    %365 = vmatpush.msra.mxu0 %v112
    %366 = vmatpush.msra.mxu0 %v111
    %367 = vmatpush.msra.mxu0 %v110
    %368 = vmatpush.msra.mxu0 %v109
    %369 = vmatpush.msra.mxu0 %v108
    %370 = vmatpush.msra.mxu0 %v107
    %371 = vmatpush.msra.mxu0 %v106
    %372 = vmatpush.msra.mxu0 %v105
    %373 = vmatpush.msra.mxu0 %v104
    %374 = vmatpush.msra.mxu0 %v103
    %375 = vmatpush.msra.mxu0 %v102
    %376 = vmatpush.msra.mxu0 %v101
    %377 = vmatpush.msra.mxu0 %v100
    %378 = vmatpush.msra.mxu0 %v99
    %379 = vmatpush.msra.mxu0 %v98
    %380 = vmatpush.msra.mxu0 %v97
    %381 = vmatmul.f32.gmra.mxu0 %v51
    %v382 = vpop.f32.mrf.mxu0
    %v383 = vadd.f32 %v363, %v382
    %384 = vdwg.mxu0
    %385 = vmatpush.msra.mxu0 %v128
    %386 = vmatpush.msra.mxu0 %v127
    %387 = vmatpush.msra.mxu0 %v126
    %388 = vmatpush.msra.mxu0 %v125
    %389 = vmatpush.msra.mxu0 %v124
    %390 = vmatpush.msra.mxu0 %v123
    %391 = vmatpush.msra.mxu0 %v122
    %392 = vmatpush.msra.mxu0 %v121
    %393 = vmatpush.msra.mxu0 %v120
    %394 = vmatpush.msra.mxu0 %v119
    %395 = vmatpush.msra.mxu0 %v118
    %396 = vmatpush.msra.mxu0 %v117
    %397 = vmatpush.msra.mxu0 %v116
    %398 = vmatpush.msra.mxu0 %v115
    %399 = vmatpush.msra.mxu0 %v114
    %400 = vmatpush.msra.mxu0 %v113
    %401 = vmatmul.f32.gmra.mxu0 %v52
    %v402 = vpop.f32.mrf.mxu0
    %v403 = vadd.f32 %v383, %v402
    %404 = vdwg.mxu0
    %405 = vmatpush.msra.mxu0 %v144
    %406 = vmatpush.msra.mxu0 %v143
    %407 = vmatpush.msra.mxu0 %v142
    %408 = vmatpush.msra.mxu0 %v141
    %409 = vmatpush.msra.mxu0 %v140
    %410 = vmatpush.msra.mxu0 %v139
    %411 = vmatpush.msra.mxu0 %v138
    %412 = vmatpush.msra.mxu0 %v137
    %413 = vmatpush.msra.mxu0 %v136
    %414 = vmatpush.msra.mxu0 %v135
    %415 = vmatpush.msra.mxu0 %v134
    %416 = vmatpush.msra.mxu0 %v133
    %417 = vmatpush.msra.mxu0 %v132
    %418 = vmatpush.msra.mxu0 %v131
    %419 = vmatpush.msra.mxu0 %v130
    %420 = vmatpush.msra.mxu0 %v129
    %421 = vmatmul.f32.gmra.mxu0 %v53
    %v422 = vpop.f32.mrf.mxu0
    %v423 = vadd.f32 %v403, %v422
    %424 = vdwg.mxu0
    %425 = vmatpush.msra.mxu0 %v160
    %426 = vmatpush.msra.mxu0 %v159
    %427 = vmatpush.msra.mxu0 %v158
    %428 = vmatpush.msra.mxu0 %v157
    %429 = vmatpush.msra.mxu0 %v156
    %430 = vmatpush.msra.mxu0 %v155
    %431 = vmatpush.msra.mxu0 %v154
    %432 = vmatpush.msra.mxu0 %v153
    %433 = vmatpush.msra.mxu0 %v152
    %434 = vmatpush.msra.mxu0 %v151
    %435 = vmatpush.msra.mxu0 %v150
    %436 = vmatpush.msra.mxu0 %v149
    %437 = vmatpush.msra.mxu0 %v148
    %438 = vmatpush.msra.mxu0 %v147
    %439 = vmatpush.msra.mxu0 %v146
    %440 = vmatpush.msra.mxu0 %v145
    %441 = vmatmul.f32.gmra.mxu0 %v54
    %v442 = vpop.f32.mrf.mxu0
    %v443 = vadd.f32 %v423, %v442
    %444 = vdwg.mxu0
    %445 = vmatpush.msra.mxu0 %v176
    %446 = vmatpush.msra.mxu0 %v175
    %447 = vmatpush.msra.mxu0 %v174
    %448 = vmatpush.msra.mxu0 %v173
    %449 = vmatpush.msra.mxu0 %v172
    %450 = vmatpush.msra.mxu0 %v171
    %451 = vmatpush.msra.mxu0 %v170
    %452 = vmatpush.msra.mxu0 %v169
    %453 = vmatpush.msra.mxu0 %v168
    %454 = vmatpush.msra.mxu0 %v167
    %455 = vmatpush.msra.mxu0 %v166
    %456 = vmatpush.msra.mxu0 %v165
    %457 = vmatpush.msra.mxu0 %v164
    %458 = vmatpush.msra.mxu0 %v163
    %459 = vmatpush.msra.mxu0 %v162
    %460 = vmatpush.msra.mxu0 %v161
    %461 = vmatmul.f32.gmra.mxu0 %v55
    %v462 = vpop.f32.mrf.mxu0
    %v463 = vadd.f32 %v443, %v462
    %464 = vdwg.mxu0
    %465 = vmatpush.msra.mxu0 %v192
    %466 = vmatpush.msra.mxu0 %v191
    %467 = vmatpush.msra.mxu0 %v190
    %468 = vmatpush.msra.mxu0 %v189
    %469 = vmatpush.msra.mxu0 %v188
    %470 = vmatpush.msra.mxu0 %v187
    %471 = vmatpush.msra.mxu0 %v186
    %472 = vmatpush.msra.mxu0 %v185
    %473 = vmatpush.msra.mxu0 %v184
    %474 = vmatpush.msra.mxu0 %v183
    %475 = vmatpush.msra.mxu0 %v182
    %476 = vmatpush.msra.mxu0 %v181
    %477 = vmatpush.msra.mxu0 %v180
    %478 = vmatpush.msra.mxu0 %v179
    %479 = vmatpush.msra.mxu0 %v178
    %480 = vmatpush.msra.mxu0 %v177
    %481 = vmatmul.f32.gmra.mxu0 %v56
    %v482 = vpop.f32.mrf.mxu0
    %v483 = vadd.f32 %v463, %v482
    %484 = vdwg.mxu0
    %485 = vmatpush.msra.mxu0 %v208
    %486 = vmatpush.msra.mxu0 %v207
    %487 = vmatpush.msra.mxu0 %v206
    %488 = vmatpush.msra.mxu0 %v205
    %489 = vmatpush.msra.mxu0 %v204
    %490 = vmatpush.msra.mxu0 %v203
    %491 = vmatpush.msra.mxu0 %v202
    %492 = vmatpush.msra.mxu0 %v201
    %493 = vmatpush.msra.mxu0 %v200
    %494 = vmatpush.msra.mxu0 %v199
    %495 = vmatpush.msra.mxu0 %v198
    %496 = vmatpush.msra.mxu0 %v197
    %497 = vmatpush.msra.mxu0 %v196
    %498 = vmatpush.msra.mxu0 %v195
    %499 = vmatpush.msra.mxu0 %v194
    %500 = vmatpush.msra.mxu0 %v193
    %501 = vmatmul.f32.gmra.mxu0 %v57
    %v502 = vpop.f32.mrf.mxu0
    %v503 = vadd.f32 %v483, %v502
    %504 = vdwg.mxu0
    %505 = vmatpush.msra.mxu0 %v224
    %506 = vmatpush.msra.mxu0 %v223
    %507 = vmatpush.msra.mxu0 %v222
    %508 = vmatpush.msra.mxu0 %v221
    %509 = vmatpush.msra.mxu0 %v220
    %510 = vmatpush.msra.mxu0 %v219
    %511 = vmatpush.msra.mxu0 %v218
    %512 = vmatpush.msra.mxu0 %v217
    %513 = vmatpush.msra.mxu0 %v216
    %514 = vmatpush.msra.mxu0 %v215
    %515 = vmatpush.msra.mxu0 %v214
    %516 = vmatpush.msra.mxu0 %v213
    %517 = vmatpush.msra.mxu0 %v212
    %518 = vmatpush.msra.mxu0 %v211
    %519 = vmatpush.msra.mxu0 %v210
    %520 = vmatpush.msra.mxu0 %v209
    %521 = vmatmul.f32.gmra.mxu0 %v58
    %v522 = vpop.f32.mrf.mxu0
    %v523 = vadd.f32 %v503, %v522
    %524 = vdwg.mxu0
    %525 = vmatpush.msra.mxu0 %v240
    %526 = vmatpush.msra.mxu0 %v239
    %527 = vmatpush.msra.mxu0 %v238
    %528 = vmatpush.msra.mxu0 %v237
    %529 = vmatpush.msra.mxu0 %v236
    %530 = vmatpush.msra.mxu0 %v235
    %531 = vmatpush.msra.mxu0 %v234
    %532 = vmatpush.msra.mxu0 %v233
    %533 = vmatpush.msra.mxu0 %v232
    %534 = vmatpush.msra.mxu0 %v231
    %535 = vmatpush.msra.mxu0 %v230
    %536 = vmatpush.msra.mxu0 %v229
    %537 = vmatpush.msra.mxu0 %v228
    %538 = vmatpush.msra.mxu0 %v227
    %539 = vmatpush.msra.mxu0 %v226
    %540 = vmatpush.msra.mxu0 %v225
    %541 = vmatmul.f32.gmra.mxu0 %v59
    %v542 = vpop.f32.mrf.mxu0
    %v543 = vadd.f32 %v523, %v542
    %544 = vdwg.mxu0
    %545 = vmatpush.msra.mxu0 %v256
    %546 = vmatpush.msra.mxu0 %v255
    %547 = vmatpush.msra.mxu0 %v254
    %548 = vmatpush.msra.mxu0 %v253
    %549 = vmatpush.msra.mxu0 %v252
    %550 = vmatpush.msra.mxu0 %v251
    %551 = vmatpush.msra.mxu0 %v250
    %552 = vmatpush.msra.mxu0 %v249
    %553 = vmatpush.msra.mxu0 %v248
    %554 = vmatpush.msra.mxu0 %v247
    %555 = vmatpush.msra.mxu0 %v246
    %556 = vmatpush.msra.mxu0 %v245
    %557 = vmatpush.msra.mxu0 %v244
    %558 = vmatpush.msra.mxu0 %v243
    %559 = vmatpush.msra.mxu0 %v242
    %560 = vmatpush.msra.mxu0 %v241
    %561 = vmatmul.f32.gmra.mxu0 %v60
    %v562 = vpop.f32.mrf.mxu0
    %v563 = vadd.f32 %v543, %v562
    %564 = vdwg.mxu0
    %565 = vmatpush.msra.mxu0 %v272
    %566 = vmatpush.msra.mxu0 %v271
    %567 = vmatpush.msra.mxu0 %v270
    %568 = vmatpush.msra.mxu0 %v269
    %569 = vmatpush.msra.mxu0 %v268
    %570 = vmatpush.msra.mxu0 %v267
    %571 = vmatpush.msra.mxu0 %v266
    %572 = vmatpush.msra.mxu0 %v265
    %573 = vmatpush.msra.mxu0 %v264
    %574 = vmatpush.msra.mxu0 %v263
    %575 = vmatpush.msra.mxu0 %v262
    %576 = vmatpush.msra.mxu0 %v261
    %577 = vmatpush.msra.mxu0 %v260
    %578 = vmatpush.msra.mxu0 %v259
    %579 = vmatpush.msra.mxu0 %v258
    %580 = vmatpush.msra.mxu0 %v257
    %581 = vmatmul.f32.gmra.mxu0 %v61
    %v582 = vpop.f32.mrf.mxu0
    %v583 = vadd.f32 %v563, %v582
    %584 = vdwg.mxu0
    %585 = vmatpush.msra.mxu0 %v288
    %586 = vmatpush.msra.mxu0 %v287
    %587 = vmatpush.msra.mxu0 %v286
    %588 = vmatpush.msra.mxu0 %v285
    %589 = vmatpush.msra.mxu0 %v284
    %590 = vmatpush.msra.mxu0 %v283
    %591 = vmatpush.msra.mxu0 %v282
    %592 = vmatpush.msra.mxu0 %v281
    %593 = vmatpush.msra.mxu0 %v280
    %594 = vmatpush.msra.mxu0 %v279
    %595 = vmatpush.msra.mxu0 %v278
    %596 = vmatpush.msra.mxu0 %v277
    %597 = vmatpush.msra.mxu0 %v276
    %598 = vmatpush.msra.mxu0 %v275
    %599 = vmatpush.msra.mxu0 %v274
    %600 = vmatpush.msra.mxu0 %v273
    %601 = vmatmul.f32.gmra.mxu0 %v62
    %v602 = vpop.f32.mrf.mxu0
    %v603 = vadd.f32 %v583, %v602
    %604 = vdwg.mxu0
    %605 = vmatpush.msra.mxu0 %v304
    %606 = vmatpush.msra.mxu0 %v303
    %607 = vmatpush.msra.mxu0 %v302
    %608 = vmatpush.msra.mxu0 %v301
    %609 = vmatpush.msra.mxu0 %v300
    %610 = vmatpush.msra.mxu0 %v299
    %611 = vmatpush.msra.mxu0 %v298
    %612 = vmatpush.msra.mxu0 %v297
    %613 = vmatpush.msra.mxu0 %v296
    %614 = vmatpush.msra.mxu0 %v295
    %615 = vmatpush.msra.mxu0 %v294
    %616 = vmatpush.msra.mxu0 %v293
    %617 = vmatpush.msra.mxu0 %v292
    %618 = vmatpush.msra.mxu0 %v291
    %619 = vmatpush.msra.mxu0 %v290
    %620 = vmatpush.msra.mxu0 %v289
    %621 = vmatmul.f32.gmra.mxu0 %v63
    %v622 = vpop.f32.mrf.mxu0
    %v623 = vadd.f32 %v603, %v622
    %624 = vdwg.mxu0
    %625 = vmatpush.msra.mxu0 %v320
    %626 = vmatpush.msra.mxu0 %v319
    %627 = vmatpush.msra.mxu0 %v318
    %628 = vmatpush.msra.mxu0 %v317
    %629 = vmatpush.msra.mxu0 %v316
    %630 = vmatpush.msra.mxu0 %v315
    %631 = vmatpush.msra.mxu0 %v314
    %632 = vmatpush.msra.mxu0 %v313
    %633 = vmatpush.msra.mxu0 %v312
    %634 = vmatpush.msra.mxu0 %v311
    %635 = vmatpush.msra.mxu0 %v310
    %636 = vmatpush.msra.mxu0 %v309
    %637 = vmatpush.msra.mxu0 %v308
    %638 = vmatpush.msra.mxu0 %v307
    %639 = vmatpush.msra.mxu0 %v306
    %640 = vmatpush.msra.mxu0 %v305
    %641 = vmatmul.f32.gmra.mxu0 %v64
    %v642 = vpop.f32.mrf.mxu0
    %v643 = vadd.f32 %v623, %v642
    %644 = vdwg.mxu0
    %s645 = sld [smem:[#allocation2]]
    %v646 = vstv %s645
    %v647 = vmul.f32 %v643, %v646
    %648 = vst [vmem:[#allocation8] sm:$0xff] %v647
    // Predicated region
    $region26: #{_ghat_matmul_scaled.1} parent=1 // pred_check
      _
    $region27: #{_ghat_matmul_scaled.1} parent=1 // pred_check_branch
      %650 = sbr.rel (0) target = $region29
    $region28: #{_ghat_matmul_scaled.1} parent=1 // pred_region
      %652 = vsyncadd [#allocation5], 0
      %s654 = sshll.u32 [#allocation8], 4
      %s655 = int_to_ptr.vmem [resolvable:$true] %s654
      %s656 = sshll.u32 %s4, 4
      %s657 = int_to_ptr.hbm [resolvable:$true] %s656
      %659 = dma.vmem_to_hbm [thread:$0]  %s655, 128, %s657, [#allocation5]
    $region29: #{_ghat_matmul_scaled.1} parent=1 // pred_fallthru
      _
    // Predicated region
    $region30: #{_ghat_matmul_scaled.1} parent=1 // pred_check
      _
    $region31: #{_ghat_matmul_scaled.1} parent=1 // pred_check_branch
      %661 = sbr.rel (0) target = $region33
    $region32: #{_ghat_matmul_scaled.1} parent=1 // pred_region
      %663 = dma.done [#allocation5], 128
    $region33: #{_ghat_matmul_scaled.1} parent=1 // pred_fallthru
      _
    %664 = vsyncpa [#allocation4], 1
    %665 = vsyncpa [#allocation7], 1
    %666 = vsyncpa [#allocation5], 1

</llo_original>
